<compile_context>
chip_gen: v7x
topology: tpu7x:2x2x1
jax: 0.10.0
libtpu: 0.0.40
codegen_flags: <defaults>
</compile_context>

<pallas_src>
import jax
import jax.numpy as jnp
from jax.experimental import pallas as pl
from jax.experimental.pallas import tpu as pltpu


def _round_up(n, m):
    return ((n + m - 1) // m) * m


def _jnp_forward(x, params):
    """Pure f32 reference / small-batch fallback (eval-mode dropout = identity)."""
    w1, b1 = params["fc1"]
    w2, b2 = params["fc2"]
    w3, b3 = params["out"]
    h1 = jnp.maximum(x @ w1.T + b1, 0.0)
    h2 = jnp.maximum(h1 @ w2.T + b2, 0.0)
    return jax.nn.sigmoid(h2 @ w3.T + b3)


def _make_meta_kernel(R):
    """Fused forward with R-way block-diagonal batch packing.

    x:  [tile_b, in]          f32 (native layout)
    w1: [R*H1, R*in]          bf16 block-diag
    b1: [R*H1, 1]             f32 (tiled R times)
    w2: [R*H2, R*H1]          bf16 block-diag
    b2: [R*H2, 1]             f32 (tiled)
    w3: [R*H2, 1]             f32 (tiled, final layer stays on the VPU/XLU)
    b3: [1, 1]                f32
    o:  [1, R, tile_b // R]   f32 (row-major flatten == batch order)
    """

    def kernel(x_ref, w1_ref, b1_ref, w2_ref, b2_ref, w3_ref, b3_ref, o_ref):
        tile_b, in_dim = x_ref.shape
        t4 = tile_b // R
        h2_dim = w2_ref.shape[0] // R

        # ---- pack x: [tile_b, in] -> [R*in, t4] bf16 (batch on lanes; R batch
        #      sub-groups stacked along the contraction axis).  Static slices +
        #      2-D transposes ride the XLU slot, hidden under MXU time.
        x = x_ref[...]
        xp = jnp.concatenate(
            [x[r * t4:(r + 1) * t4, :].T for r in range(R)], axis=0
        ).astype(jnp.bfloat16)                                    # [R*in, t4]

        # ---- fc1 + ReLU (block-diag weights; MXU bf16 in, f32 accumulate)
        h1 = jnp.dot(w1_ref[...], xp, preferred_element_type=jnp.float32)
        h1 = jnp.maximum(h1 + b1_ref[...], 0.0)                   # [R*H1, t4]
        # dropout (eval mode -> identity)

        # ---- fc2 + ReLU
        h2 = jnp.dot(w2_ref[...], h1.astype(jnp.bfloat16),
                     preferred_element_type=jnp.float32)
        h2 = jnp.maximum(h2 + b2_ref[...], 0.0)                   # [R*H2, t4]
        # dropout (eval mode -> identity)

        # ---- output layer: VPU multiply + per-replica cross-sublane reduction
        #      (XLU) + EUP sigmoid.  Result is lane-dense [R, t4].
        prod = h2 * w3_ref[...]                                   # [R*H2, t4]
        logits = jnp.concatenate(
            [jnp.sum(prod[r * h2_dim:(r + 1) * h2_dim, :], axis=0, keepdims=True)
             for r in range(R)], axis=0) + b3_ref[...]            # [R, t4]
        o_ref[...] = jax.nn.sigmoid(logits).reshape(1, R, t4).astype(o_ref.dtype)

    return kernel


def meta_model_forward(x, params, *, tile_b=8192, replicas=4,
                       min_pallas_batch=256, force_pallas=False):
    """x: [B, input_size] f32.  params: PyTorch-layout weights W [out, in], b [out]."""
    w1, b1 = params["fc1"]
    w2, b2 = params["fc2"]
    w3, b3 = params["out"]

    B, in_dim = x.shape
    H1 = w1.shape[0]
    H2 = w2.shape[0]

    if B < min_pallas_batch and not force_pallas:
        # Tiny problem (< a few hundred rows): launch + padding cost dominates,
        # plain XLA fusion matches or beats the kernel.
        return _jnp_forward(x.astype(jnp.float32), params)

    R = replicas

    # ---- batch tile selection: multiple of 128 (divisible by R=4) ----------
    b128 = _round_up(B, 128)
    if b128 <= tile_b:
        if b128 >= 1024:
            # Split into 2 parallel tiles so both v7x TensorCores get work.
            tile = _round_up(b128 // 2, 128)
        else:
            tile = b128
    else:
        tile = tile_b            # capped -> VMEM live set ~7 MiB, safe on v7x
    b_pad = _round_up(B, tile)
    num_tiles = b_pad // tile
    t4 = tile // R

    xin = x.astype(jnp.float32)
    if b_pad != B:
        xin = jnp.pad(xin, ((0, b_pad - B), (0, 0)))

    # ---- block-diagonal replica packing of the tiny weights (wrapper, O(KB)) -
    eye_bf16 = jnp.eye(R, dtype=jnp.bfloat16)
    w1bd = jnp.kron(eye_bf16, w1.astype(jnp.bfloat16))            # [R*H1, R*in]
    w2bd = jnp.kron(eye_bf16, w2.astype(jnp.bfloat16))            # [R*H2, R*H1]
    b1t = jnp.tile(b1.astype(jnp.float32), R).reshape(R * H1, 1)
    b2t = jnp.tile(b2.astype(jnp.float32), R).reshape(R * H2, 1)
    w3t = jnp.tile(w3.reshape(-1).astype(jnp.float32), R).reshape(R * H2, 1)
    b3c = b3.reshape(1, 1).astype(jnp.float32)

    def resident(shape):
        # Full-array block, same block index every step -> stays VMEM-resident.
        return pl.BlockSpec(shape, lambda i: (0,) * len(shape))

    flops = 2 * b_pad * (in_dim * H1 + H1 * H2 + H2)
    bytes_accessed = (b_pad * in_dim * 4 + b_pad * 4
                      + (R * H1 * R * in_dim + R * H2 * R * H1) * 2
                      + (R * (H1 + 2 * H2) + 1) * 4)

    out = pl.pallas_call(
        _make_meta_kernel(R),
        out_shape=jax.ShapeDtypeStruct((num_tiles, R, t4), jnp.float32),
        grid_spec=pltpu.PrefetchScalarGridSpec(
            num_scalar_prefetch=0,
            grid=(num_tiles,),
            in_specs=[
                pl.BlockSpec((tile, in_dim), lambda i: (i, 0)),   # native-layout x
                resident((R * H1, R * in_dim)),
                resident((R * H1, 1)),
                resident((R * H2, R * H1)),
                resident((R * H2, 1)),
                resident((R * H2, 1)),
                resident((1, 1)),
            ],
            out_specs=pl.BlockSpec((1, R, t4), lambda i: (i, 0, 0)),
        ),
        compiler_params=pltpu.CompilerParams(
            dimension_semantics=("parallel",)),
        cost_estimate=pl.CostEstimate(
            flops=flops, transcendentals=b_pad, bytes_accessed=bytes_accessed),
    )(xin, w1bd, b1t, w2bd, b2t, w3t, b3c)

    # [num_tiles, R, t4] row-major flatten == (tile, sub-group, col) == batch order.
    return out.reshape(b_pad)[:B].reshape(B, 1)


def init_linear(key, fan_in, fan_out):
    """Deterministic init mimicking nn.Linear: U(-1/sqrt(fan_in), 1/sqrt(fan_in)).
    Weight returned in PyTorch layout [fan_out, fan_in], bias [fan_out]."""
    kw, kb = jax.random.split(key)
    bound = 1.0 / jnp.sqrt(jnp.asarray(fan_in, jnp.float32))
    w = jax.random.uniform(kw, (fan_out, fan_in), jnp.float32, -bound, bound)
    b = jax.random.uniform(kb, (fan_out,), jnp.float32, -bound, bound)
    return w, b


if __name__ == "__main__":
    input_size = 32
    hidden_size1 = 64
    hidden_size2 = 32
    # dropout_rate is unused at inference (identity).

    key = jax.random.PRNGKey(0)
    kx1, kx2, k1, k2, k3 = jax.random.split(key, 5)
    params = {
        "fc1": init_linear(k1, input_size, hidden_size1),
        "fc2": init_linear(k2, hidden_size1, hidden_size2),
        "out": init_linear(k3, hidden_size2, 1),
    }

    # 1) Small batch forced through the Pallas path (tile clamps to 128).
    x_small = jax.random.normal(kx1, (8, input_size), jnp.float32)
    out_small = jax.block_until_ready(
        meta_model_forward(x_small, params, force_pallas=True))
    ref_small = _jnp_forward(x_small, params)
    assert out_small.shape == (8, 1)
    assert bool(jnp.all((out_small >= 0.0) & (out_small <= 1.0)))
    assert bool(jnp.allclose(out_small, ref_small, atol=2e-2, rtol=2e-2)), (
        f"max abs diff {float(jnp.max(jnp.abs(out_small - ref_small)))}")

    # 2) Larger, non-multiple-of-128 batch through the normal Pallas path
    #    (exercises padding + the packed-replica layout).
    x_big = jax.random.normal(kx2, (500, input_size), jnp.float32)
    out_big = jax.block_until_ready(meta_model_forward(x_big, params))
    ref_big = _jnp_forward(x_big, params)
    assert out_big.shape == (500, 1)
    assert bool(jnp.all((out_big >= 0.0) & (out_big <= 1.0)))
    assert bool(jnp.allclose(out_big, ref_big, atol=2e-2, rtol=2e-2)), (
        f"max abs diff {float(jnp.max(jnp.abs(out_big - ref_big)))}")

    print("KERNEL_OK")
</pallas_src>

<mosaic_0001>
module attributes {stable_mosaic.version = 11 : i64} {
  func.func @kernel(%arg0: i32, %arg1: memref<128x32xf32, #tpu.memory_space<vmem>>, %arg2: memref<256x128xbf16, #tpu.memory_space<vmem>>, %arg3: memref<256x1xf32, #tpu.memory_space<vmem>>, %arg4: memref<128x256xbf16, #tpu.memory_space<vmem>>, %arg5: memref<128x1xf32, #tpu.memory_space<vmem>>, %arg6: memref<128x1xf32, #tpu.memory_space<vmem>>, %arg7: memref<1x1xf32, #tpu.memory_space<vmem>>, %arg8: memref<1x4x32xf32, #tpu.memory_space<vmem>>) attributes {dimension_semantics = [#tpu.dimension_semantics<parallel>], iteration_bounds = array<i64: 1>, scalar_prefetch = 0 : i64, scratch_operands = 0 : i64, tpu.core_type = #tpu.core_type<tc>, window_params = [{transform_indices = @transform_0, window_bounds = array<i64: 128, 32>}, {pipeline_mode = #tpu.pipeline_mode<synchronous>, transform_indices = @transform_1, window_bounds = array<i64: 256, 128>}, {pipeline_mode = #tpu.pipeline_mode<synchronous>, transform_indices = @transform_2, window_bounds = array<i64: 256, 1>}, {pipeline_mode = #tpu.pipeline_mode<synchronous>, transform_indices = @transform_3, window_bounds = array<i64: 128, 256>}, {pipeline_mode = #tpu.pipeline_mode<synchronous>, transform_indices = @transform_4, window_bounds = array<i64: 128, 1>}, {pipeline_mode = #tpu.pipeline_mode<synchronous>, transform_indices = @transform_5, window_bounds = array<i64: 128, 1>}, {pipeline_mode = #tpu.pipeline_mode<synchronous>, transform_indices = @transform_6, window_bounds = array<i64: 1, 1>}, {transform_indices = @transform_7, window_bounds = array<i64: 1, 4, 32>}]} {
    %c0 = arith.constant 0 : index
    %c0_0 = arith.constant 0 : index
    %0 = vector.load %arg1[%c0, %c0_0] : memref<128x32xf32, #tpu.memory_space<vmem>>, vector<128x32xf32>
    %1 = vector.extract_strided_slice %0 {offsets = [0, 0], sizes = [32, 32], strides = [1, 1]} : vector<128x32xf32> to vector<32x32xf32>
    %2 = tpu.transpose %1, [1, 0] : vector<32x32xf32> -> vector<32x32xf32>
    %3 = vector.extract_strided_slice %0 {offsets = [32, 0], sizes = [32, 32], strides = [1, 1]} : vector<128x32xf32> to vector<32x32xf32>
    %4 = tpu.transpose %3, [1, 0] : vector<32x32xf32> -> vector<32x32xf32>
    %5 = vector.extract_strided_slice %0 {offsets = [64, 0], sizes = [32, 32], strides = [1, 1]} : vector<128x32xf32> to vector<32x32xf32>
    %6 = tpu.transpose %5, [1, 0] : vector<32x32xf32> -> vector<32x32xf32>
    %7 = vector.extract_strided_slice %0 {offsets = [96, 0], sizes = [32, 32], strides = [1, 1]} : vector<128x32xf32> to vector<32x32xf32>
    %8 = tpu.transpose %7, [1, 0] : vector<32x32xf32> -> vector<32x32xf32>
    %9 = tpu.concatenate %2, %4, %6, %8 in 0 : vector<32x32xf32>, vector<32x32xf32>, vector<32x32xf32>, vector<32x32xf32> -> vector<128x32xf32>
    %10 = arith.truncf %9 : vector<128x32xf32> to vector<128x32xbf16>
    %c0_1 = arith.constant 0 : index
    %c0_2 = arith.constant 0 : index
    %11 = vector.load %arg2[%c0_1, %c0_2] : memref<256x128xbf16, #tpu.memory_space<vmem>>, vector<256x128xbf16>
    %cst = arith.constant dense<0.000000e+00> : vector<256x32xf32>
    %12 = tpu.matmul %11, %10, %cst {dimension_numbers = #tpu.dot_dimension_numbers<[1], [0], [0], [1], [0, 0, 1, 1], [], []>} : vector<256x128xbf16>, vector<128x32xbf16>, vector<256x32xf32> -> vector<256x32xf32>
    %c0_3 = arith.constant 0 : index
    %c0_4 = arith.constant 0 : index
    %13 = vector.load %arg3[%c0_3, %c0_4] : memref<256x1xf32, #tpu.memory_space<vmem>>, vector<256x1xf32>
    %14 = vector.broadcast %13 : vector<256x1xf32> to vector<256x32xf32>
    %15 = arith.addf %12, %14 : vector<256x32xf32>
    %cst_5 = arith.constant 0.000000e+00 : f32
    %16 = vector.broadcast %cst_5 : f32 to vector<256x32xf32>
    %17 = arith.maximumf %15, %16 : vector<256x32xf32>
    %c0_6 = arith.constant 0 : index
    %c0_7 = arith.constant 0 : index
    %18 = vector.load %arg4[%c0_6, %c0_7] : memref<128x256xbf16, #tpu.memory_space<vmem>>, vector<128x256xbf16>
    %19 = arith.truncf %17 : vector<256x32xf32> to vector<256x32xbf16>
    %cst_8 = arith.constant dense<0.000000e+00> : vector<128x32xf32>
    %20 = tpu.matmul %18, %19, %cst_8 {dimension_numbers = #tpu.dot_dimension_numbers<[1], [0], [0], [1], [0, 0, 1, 1], [], []>} : vector<128x256xbf16>, vector<256x32xbf16>, vector<128x32xf32> -> vector<128x32xf32>
    %c0_9 = arith.constant 0 : index
    %c0_10 = arith.constant 0 : index
    %21 = vector.load %arg5[%c0_9, %c0_10] : memref<128x1xf32, #tpu.memory_space<vmem>>, vector<128x1xf32>
    %22 = vector.broadcast %21 : vector<128x1xf32> to vector<128x32xf32>
    %23 = arith.addf %20, %22 : vector<128x32xf32>
    %cst_11 = arith.constant 0.000000e+00 : f32
    %24 = vector.broadcast %cst_11 : f32 to vector<128x32xf32>
    %25 = arith.maximumf %23, %24 : vector<128x32xf32>
    %c0_12 = arith.constant 0 : index
    %c0_13 = arith.constant 0 : index
    %26 = vector.load %arg6[%c0_12, %c0_13] : memref<128x1xf32, #tpu.memory_space<vmem>>, vector<128x1xf32>
    %27 = vector.broadcast %26 : vector<128x1xf32> to vector<128x32xf32>
    %28 = arith.mulf %25, %27 : vector<128x32xf32>
    %29 = vector.extract_strided_slice %28 {offsets = [0, 0], sizes = [32, 32], strides = [1, 1]} : vector<128x32xf32> to vector<32x32xf32>
    %cst_14 = arith.constant dense<0.000000e+00> : vector<32xf32>
    %30 = vector.multi_reduction <add>, %29, %cst_14 [0] : vector<32x32xf32> to vector<32xf32>
    %31 = vector.shape_cast %30 : vector<32xf32> to vector<1x32xf32>
    %32 = vector.extract_strided_slice %28 {offsets = [32, 0], sizes = [32, 32], strides = [1, 1]} : vector<128x32xf32> to vector<32x32xf32>
    %cst_15 = arith.constant dense<0.000000e+00> : vector<32xf32>
    %33 = vector.multi_reduction <add>, %32, %cst_15 [0] : vector<32x32xf32> to vector<32xf32>
    %34 = vector.shape_cast %33 : vector<32xf32> to vector<1x32xf32>
    %35 = vector.extract_strided_slice %28 {offsets = [64, 0], sizes = [32, 32], strides = [1, 1]} : vector<128x32xf32> to vector<32x32xf32>
    %cst_16 = arith.constant dense<0.000000e+00> : vector<32xf32>
    %36 = vector.multi_reduction <add>, %35, %cst_16 [0] : vector<32x32xf32> to vector<32xf32>
    %37 = vector.shape_cast %36 : vector<32xf32> to vector<1x32xf32>
    %38 = vector.extract_strided_slice %28 {offsets = [96, 0], sizes = [32, 32], strides = [1, 1]} : vector<128x32xf32> to vector<32x32xf32>
    %cst_17 = arith.constant dense<0.000000e+00> : vector<32xf32>
    %39 = vector.multi_reduction <add>, %38, %cst_17 [0] : vector<32x32xf32> to vector<32xf32>
    %40 = vector.shape_cast %39 : vector<32xf32> to vector<1x32xf32>
    %41 = tpu.concatenate %31, %34, %37, %40 in 0 : vector<1x32xf32>, vector<1x32xf32>, vector<1x32xf32>, vector<1x32xf32> -> vector<4x32xf32>
    %c0_18 = arith.constant 0 : index
    %c0_19 = arith.constant 0 : index
    %42 = vector.load %arg7[%c0_18, %c0_19] : memref<1x1xf32, #tpu.memory_space<vmem>>, vector<1x1xf32>
    %43 = vector.broadcast %42 : vector<1x1xf32> to vector<4x32xf32>
    %44 = arith.addf %41, %43 : vector<4x32xf32>
    %45 = arith.negf %44 : vector<4x32xf32>
    %46 = math.exp %45 : vector<4x32xf32>
    %cst_20 = arith.constant 1.000000e+00 : f32
    %47 = vector.broadcast %cst_20 : f32 to vector<4x32xf32>
    %48 = arith.addf %47, %46 : vector<4x32xf32>
    %49 = arith.divf %47, %48 : vector<4x32xf32>
    %50 = vector.shape_cast %49 : vector<4x32xf32> to vector<1x4x32xf32>
    %c0_21 = arith.constant 0 : index
    %c0_22 = arith.constant 0 : index
    %c0_23 = arith.constant 0 : index
    %51 = vector.load %arg8[%c0_21, %c0_22, %c0_23] : memref<1x4x32xf32, #tpu.memory_space<vmem>>, vector<1x4x32xf32>
    tpu.vector_store %arg8[%c0_21, %c0_22, %c0_23], %50 {strides = array<i32>} : memref<1x4x32xf32, #tpu.memory_space<vmem>>, vector<1x4x32xf32>,
    return
  }
  func.func @transform_0(%arg0: i32) -> (i32, i32) {
    %c0_i32 = arith.constant 0 : i32
    %c0_i32_0 = arith.constant 0 : i32
    return %arg0, %c0_i32 : i32, i32
  }
  func.func @transform_1(%arg0: i32) -> (i32, i32) {
    %c0_i32 = arith.constant 0 : i32
    %c0_i32_0 = arith.constant 0 : i32
    %c0_i32_1 = arith.constant 0 : i32
    return %c0_i32, %c0_i32_0 : i32, i32
  }
  func.func @transform_2(%arg0: i32) -> (i32, i32) {
    %c0_i32 = arith.constant 0 : i32
    %c0_i32_0 = arith.constant 0 : i32
    %c0_i32_1 = arith.constant 0 : i32
    return %c0_i32, %c0_i32_0 : i32, i32
  }
  func.func @transform_3(%arg0: i32) -> (i32, i32) {
    %c0_i32 = arith.constant 0 : i32
    %c0_i32_0 = arith.constant 0 : i32
    %c0_i32_1 = arith.constant 0 : i32
    return %c0_i32, %c0_i32_0 : i32, i32
  }
  func.func @transform_4(%arg0: i32) -> (i32, i32) {
    %c0_i32 = arith.constant 0 : i32
    %c0_i32_0 = arith.constant 0 : i32
    %c0_i32_1 = arith.constant 0 : i32
    return %c0_i32, %c0_i32_0 : i32, i32
  }
  func.func @transform_5(%arg0: i32) -> (i32, i32) {
    %c0_i32 = arith.constant 0 : i32
    %c0_i32_0 = arith.constant 0 : i32
    %c0_i32_1 = arith.constant 0 : i32
    return %c0_i32, %c0_i32_0 : i32, i32
  }
  func.func @transform_6(%arg0: i32) -> (i32, i32) {
    %c0_i32 = arith.constant 0 : i32
    %c0_i32_0 = arith.constant 0 : i32
    %c0_i32_1 = arith.constant 0 : i32
    return %c0_i32, %c0_i32_0 : i32, i32
  }
  func.func @transform_7(%arg0: i32) -> (i32, i32, i32) {
    %c0_i32 = arith.constant 0 : i32
    %c0_i32_0 = arith.constant 0 : i32
    %c0_i32_1 = arith.constant 0 : i32
    return %arg0, %c0_i32, %c0_i32_0 : i32, i32, i32
  }
}

</mosaic_0001>

<llo_original>
// kernel: tpu_custom_call.1
$region0: #{tpu_custom_call.1}
  #allocation0 [shape = 'u32[]', space=smem, size = 0x4, offset = 0x4, fixed_abs, tag = 'smem constant byte address 0x4 - core index']
  #allocation1 [shape = 'u32[144,128]{1,0:T(1,128)}', space=vmem, size = 0x12000, scoped, tag = 'internal scratch']
  #allocation2 [shape = 'f32[1,1]{1,0:T(1,128)S(1)}', space=vmem, size = 0x200, scoped, tag = 'scoped memory for tpu_custom_call.1']
  %s0 = inlined_call_operand.vmem [shape: f32[128,32], index: 0, kind: input, shape index: {}]
  %s1 = inlined_call_operand.vmem [shape: bf16[256,128], index: 1, kind: input, shape index: {}]
  %s2 = inlined_call_operand.vmem [shape: f32[256,1], index: 2, kind: input, shape index: {}]
  %s3 = inlined_call_operand.vmem [shape: bf16[128,256], index: 3, kind: input, shape index: {}]
  %s4 = inlined_call_operand.vmem [shape: f32[128,1], index: 4, kind: input, shape index: {}]
  %s5 = inlined_call_operand.vmem [shape: f32[128,1], index: 5, kind: input, shape index: {}]
  %s6 = inlined_call_operand.<no memory space> [shape: f32[1,1], index: 6, kind: input, shape index: {}]
  %s7 = inlined_call_operand.hbm [shape: f32[1,4,32], index: 7, kind: output, shape index: {}]
  %s8 = sld [smem:[#allocation0]]
  $region38: #{tpu_custom_call.1} parent=0
    _
  %s10 = ssub.s32 1, %s8
  %s11 = scalar_select 0, %s10, %s8
  %v12 = vstv %s6
  %13 = vst [vmem:[#allocation2] sm:$0x1] %v12
  $region1: #{tpu_custom_call.1} parent=0
    #allocation3 [shape = 'u8[2048]{0}', space=vmem, size = 0x800, scoped, tag = 'output window, operand 0, single buffered']
    #allocation4 [shape = 's32[1]{0}', space=sflag, size = 0x4, scoped, tag = 'scoped memory for tpu_custom_call.1']
    %14 = vsyncpa [#allocation4], 0
    // Predicated region
    $region2: #{tpu_custom_call.1} parent=1 // pred_check
      _
    $region3: #{tpu_custom_call.1} parent=1 // pred_check_branch
      %16 = sbr.rel (0) target = $region5
    $region4: #{tpu_custom_call.1} parent=1 // pred_region
      _
    $region5: #{tpu_custom_call.1} parent=1 // pred_fallthru
      _
    // Predicated region
    $region6: #{tpu_custom_call.1} parent=1 // pred_check
      _
    $region7: #{tpu_custom_call.1} parent=1 // pred_check_branch
      %18 = sbr.rel (0) target = $region9
    $region8: #{tpu_custom_call.1} parent=1 // pred_region
      _
    $region9: #{tpu_custom_call.1} parent=1 // pred_fallthru
      _
    // Predicated region
    $region10: #{tpu_custom_call.1} parent=1 // pred_check
      _
    $region11: #{tpu_custom_call.1} parent=1 // pred_check_branch
      %20 = sbr.rel (0) target = $region13
    $region12: #{tpu_custom_call.1} parent=1 // pred_region
      _
    $region13: #{tpu_custom_call.1} parent=1 // pred_fallthru
      _
    // Predicated region
    $region14: #{tpu_custom_call.1} parent=1 // pred_check
      _
    $region15: #{tpu_custom_call.1} parent=1 // pred_check_branch
      %22 = sbr.rel (0) target = $region17
    $region16: #{tpu_custom_call.1} parent=1 // pred_region
      _
    $region17: #{tpu_custom_call.1} parent=1 // pred_fallthru
      _
    // Predicated region
    $region18: #{tpu_custom_call.1} parent=1 // pred_check
      _
    $region19: #{tpu_custom_call.1} parent=1 // pred_check_branch
      %24 = sbr.rel (0) target = $region21
    $region20: #{tpu_custom_call.1} parent=1 // pred_region
      _
    $region21: #{tpu_custom_call.1} parent=1 // pred_fallthru
      _
    // Predicated region
    $region22: #{tpu_custom_call.1} parent=1 // pred_check
      _
    $region23: #{tpu_custom_call.1} parent=1 // pred_check_branch
      %26 = sbr.rel (0) target = $region25
    $region24: #{tpu_custom_call.1} parent=1 // pred_region
      _
    $region25: #{tpu_custom_call.1} parent=1 // pred_fallthru
      _
    // Predicated region
    $region26: #{tpu_custom_call.1} parent=1 // pred_check
      _
    $region27: #{tpu_custom_call.1} parent=1 // pred_check_branch
      %28 = sbr.rel (0) target = $region29
    $region28: #{tpu_custom_call.1} parent=1 // pred_region
      _
    $region29: #{tpu_custom_call.1} parent=1 // pred_fallthru
      _
    %v30 = vld [vmem:[%s0] sm:$0xff]
    %v31 = vld [vmem:[%s0 + $0x8] sm:$0xff]
    %v32 = vld [vmem:[%s0 + $0x10] sm:$0xff]
    %v33 = vld [vmem:[%s0 + $0x18] sm:$0xff]
    %v34 = vld [vmem:[%s0 + $0x20] sm:$0xff]
    %v35 = vld [vmem:[%s0 + $0x28] sm:$0xff]
    %v36 = vld [vmem:[%s0 + $0x30] sm:$0xff]
    %v37 = vld [vmem:[%s0 + $0x38] sm:$0xff]
    %v38 = vld [vmem:[%s0 + $0x40] sm:$0xff]
    %v39 = vld [vmem:[%s0 + $0x48] sm:$0xff]
    %v40 = vld [vmem:[%s0 + $0x50] sm:$0xff]
    %v41 = vld [vmem:[%s0 + $0x58] sm:$0xff]
    %v42 = vld [vmem:[%s0 + $0x60] sm:$0xff]
    %v43 = vld [vmem:[%s0 + $0x68] sm:$0xff]
    %v44 = vld [vmem:[%s0 + $0x70] sm:$0xff]
    %v45 = vld [vmem:[%s0 + $0x78] sm:$0xff]
    %46 = vxpose.xlu0.b32.start [1/16] %v30, 128
    %47 = vxpose.xlu0.b32.cont [2/16] %v31, 128
    %48 = vxpose.xlu0.b32.cont [3/16] %v32, 128
    %49 = vxpose.xlu0.b32.cont [4/16] %v33, 128
    %50 = vxpose.xlu0.b32.cont [5/16] 0.0, 128
    %51 = vxpose.xlu0.b32.cont [6/16] 0.0, 128
    %52 = vxpose.xlu0.b32.cont [7/16] 0.0, 128
    %53 = vxpose.xlu0.b32.cont [8/16] 0.0, 128
    %54 = vxpose.xlu0.b32.cont [9/16] 0.0, 128
    %55 = vxpose.xlu0.b32.cont [10/16] 0.0, 128
    %56 = vxpose.xlu0.b32.cont [11/16] 0.0, 128
    %57 = vxpose.xlu0.b32.cont [12/16] 0.0, 128
    %58 = vxpose.xlu0.b32.cont [13/16] 0.0, 128
    %59 = vxpose.xlu0.b32.cont [14/16] 0.0, 128
    %60 = vxpose.xlu0.b32.cont [15/16] 0.0, 128
    %61 = vxpose.xlu0.b32.end [16/16] 0.0, 128
    %v62 = vpop.trf.xlu0
    %v63 = vpop.trf.xlu0
    %v64 = vpop.trf.xlu0
    %v65 = vpop.trf.xlu0
    %v66 = vpop.trf.xlu0
    %v67 = vpop.trf.xlu0
    %v68 = vpop.trf.xlu0
    %v69 = vpop.trf.xlu0
    %v70 = vpop.trf.xlu0
    %v71 = vpop.trf.xlu0
    %v72 = vpop.trf.xlu0
    %v73 = vpop.trf.xlu0
    %v74 = vpop.trf.xlu0
    %v75 = vpop.trf.xlu0
    %v76 = vpop.trf.xlu0
    %v77 = vpop.trf.xlu0
    %78 = vxpose.xlu0.b32.start [1/16] %v34, 128
    %79 = vxpose.xlu0.b32.cont [2/16] %v35, 128
    %80 = vxpose.xlu0.b32.cont [3/16] %v36, 128
    %81 = vxpose.xlu0.b32.cont [4/16] %v37, 128
    %82 = vxpose.xlu0.b32.cont [5/16] 0.0, 128
    %83 = vxpose.xlu0.b32.cont [6/16] 0.0, 128
    %84 = vxpose.xlu0.b32.cont [7/16] 0.0, 128
    %85 = vxpose.xlu0.b32.cont [8/16] 0.0, 128
    %86 = vxpose.xlu0.b32.cont [9/16] 0.0, 128
    %87 = vxpose.xlu0.b32.cont [10/16] 0.0, 128
    %88 = vxpose.xlu0.b32.cont [11/16] 0.0, 128
    %89 = vxpose.xlu0.b32.cont [12/16] 0.0, 128
    %90 = vxpose.xlu0.b32.cont [13/16] 0.0, 128
    %91 = vxpose.xlu0.b32.cont [14/16] 0.0, 128
    %92 = vxpose.xlu0.b32.cont [15/16] 0.0, 128
    %93 = vxpose.xlu0.b32.end [16/16] 0.0, 128
    %v94 = vpop.trf.xlu0
    %v95 = vpop.trf.xlu0
    %v96 = vpop.trf.xlu0
    %v97 = vpop.trf.xlu0
    %v98 = vpop.trf.xlu0
    %v99 = vpop.trf.xlu0
    %v100 = vpop.trf.xlu0
    %v101 = vpop.trf.xlu0
    %v102 = vpop.trf.xlu0
    %v103 = vpop.trf.xlu0
    %v104 = vpop.trf.xlu0
    %v105 = vpop.trf.xlu0
    %v106 = vpop.trf.xlu0
    %v107 = vpop.trf.xlu0
    %v108 = vpop.trf.xlu0
    %v109 = vpop.trf.xlu0
    %110 = vxpose.xlu0.b32.start [1/16] %v38, 128
    %111 = vxpose.xlu0.b32.cont [2/16] %v39, 128
    %112 = vxpose.xlu0.b32.cont [3/16] %v40, 128
    %113 = vxpose.xlu0.b32.cont [4/16] %v41, 128
    %114 = vxpose.xlu0.b32.cont [5/16] 0.0, 128
    %115 = vxpose.xlu0.b32.cont [6/16] 0.0, 128
    %116 = vxpose.xlu0.b32.cont [7/16] 0.0, 128
    %117 = vxpose.xlu0.b32.cont [8/16] 0.0, 128
    %118 = vxpose.xlu0.b32.cont [9/16] 0.0, 128
    %119 = vxpose.xlu0.b32.cont [10/16] 0.0, 128
    %120 = vxpose.xlu0.b32.cont [11/16] 0.0, 128
    %121 = vxpose.xlu0.b32.cont [12/16] 0.0, 128
    %122 = vxpose.xlu0.b32.cont [13/16] 0.0, 128
    %123 = vxpose.xlu0.b32.cont [14/16] 0.0, 128
    %124 = vxpose.xlu0.b32.cont [15/16] 0.0, 128
    %125 = vxpose.xlu0.b32.end [16/16] 0.0, 128
    %v126 = vpop.trf.xlu0
    %v127 = vpop.trf.xlu0
    %v128 = vpop.trf.xlu0
    %v129 = vpop.trf.xlu0
    %v130 = vpop.trf.xlu0
    %v131 = vpop.trf.xlu0
    %v132 = vpop.trf.xlu0
    %v133 = vpop.trf.xlu0
    %v134 = vpop.trf.xlu0
    %v135 = vpop.trf.xlu0
    %v136 = vpop.trf.xlu0
    %v137 = vpop.trf.xlu0
    %v138 = vpop.trf.xlu0
    %v139 = vpop.trf.xlu0
    %v140 = vpop.trf.xlu0
    %v141 = vpop.trf.xlu0
    %142 = vxpose.xlu0.b32.start [1/16] %v42, 128
    %143 = vxpose.xlu0.b32.cont [2/16] %v43, 128
    %144 = vxpose.xlu0.b32.cont [3/16] %v44, 128
    %145 = vxpose.xlu0.b32.cont [4/16] %v45, 128
    %146 = vxpose.xlu0.b32.cont [5/16] 0.0, 128
    %147 = vxpose.xlu0.b32.cont [6/16] 0.0, 128
    %148 = vxpose.xlu0.b32.cont [7/16] 0.0, 128
    %149 = vxpose.xlu0.b32.cont [8/16] 0.0, 128
    %150 = vxpose.xlu0.b32.cont [9/16] 0.0, 128
    %151 = vxpose.xlu0.b32.cont [10/16] 0.0, 128
    %152 = vxpose.xlu0.b32.cont [11/16] 0.0, 128
    %153 = vxpose.xlu0.b32.cont [12/16] 0.0, 128
    %154 = vxpose.xlu0.b32.cont [13/16] 0.0, 128
    %155 = vxpose.xlu0.b32.cont [14/16] 0.0, 128
    %156 = vxpose.xlu0.b32.cont [15/16] 0.0, 128
    %157 = vxpose.xlu0.b32.end [16/16] 0.0, 128
    %v158 = vpop.trf.xlu0
    %v159 = vpop.trf.xlu0
    %v160 = vpop.trf.xlu0
    %v161 = vpop.trf.xlu0
    %v162 = vpop.trf.xlu0
    %v163 = vpop.trf.xlu0
    %v164 = vpop.trf.xlu0
    %v165 = vpop.trf.xlu0
    %v166 = vpop.trf.xlu0
    %v167 = vpop.trf.xlu0
    %v168 = vpop.trf.xlu0
    %v169 = vpop.trf.xlu0
    %v170 = vpop.trf.xlu0
    %v171 = vpop.trf.xlu0
    %v172 = vpop.trf.xlu0
    %v173 = vpop.trf.xlu0
    %v174 = vpack.c.bf16 %v63, %v62
    %v175 = vpack.c.bf16 %v65, %v64
    %v176 = vpack.c.bf16 %v95, %v94
    %v177 = vpack.c.bf16 %v97, %v96
    %v178 = vpack.c.bf16 %v127, %v126
    %v179 = vpack.c.bf16 %v129, %v128
    %v180 = vpack.c.bf16 %v159, %v158
    %v181 = vpack.c.bf16 %v161, %v160
    %v182 = vld [vmem:[%s1] sm:$0xf]
    %v183 = vld [vmem:[%s1 + $0x4] sm:$0xf]
    %v184 = vld [vmem:[%s1 + $0x8] sm:$0xf]
    %v185 = vld [vmem:[%s1 + $0xc] sm:$0xf]
    %v186 = vld [vmem:[%s1 + $0x10] sm:$0xf]
    %v187 = vld [vmem:[%s1 + $0x14] sm:$0xf]
    %v188 = vld [vmem:[%s1 + $0x18] sm:$0xf]
    %v189 = vld [vmem:[%s1 + $0x1c] sm:$0xf]
    %v190 = vld [vmem:[%s1 + $0x20] sm:$0xf]
    %v191 = vld [vmem:[%s1 + $0x24] sm:$0xf]
    %v192 = vld [vmem:[%s1 + $0x28] sm:$0xf]
    %v193 = vld [vmem:[%s1 + $0x2c] sm:$0xf]
    %v194 = vld [vmem:[%s1 + $0x30] sm:$0xf]
    %v195 = vld [vmem:[%s1 + $0x34] sm:$0xf]
    %v196 = vld [vmem:[%s1 + $0x38] sm:$0xf]
    %v197 = vld [vmem:[%s1 + $0x3c] sm:$0xf]
    %v198 = vld [vmem:[%s1 + $0x40] sm:$0xf]
    %v199 = vld [vmem:[%s1 + $0x44] sm:$0xf]
    %v200 = vld [vmem:[%s1 + $0x48] sm:$0xf]
    %v201 = vld [vmem:[%s1 + $0x4c] sm:$0xf]
    %v202 = vld [vmem:[%s1 + $0x50] sm:$0xf]
    %v203 = vld [vmem:[%s1 + $0x54] sm:$0xf]
    %v204 = vld [vmem:[%s1 + $0x58] sm:$0xf]
    %v205 = vld [vmem:[%s1 + $0x5c] sm:$0xf]
    %v206 = vld [vmem:[%s1 + $0x60] sm:$0xf]
    %v207 = vld [vmem:[%s1 + $0x64] sm:$0xf]
    %v208 = vld [vmem:[%s1 + $0x68] sm:$0xf]
    %v209 = vld [vmem:[%s1 + $0x6c] sm:$0xf]
    %v210 = vld [vmem:[%s1 + $0x70] sm:$0xf]
    %v211 = vld [vmem:[%s1 + $0x74] sm:$0xf]
    %v212 = vld [vmem:[%s1 + $0x78] sm:$0xf]
    %v213 = vld [vmem:[%s1 + $0x7c] sm:$0xf]
    %v214 = vld [vmem:[%s2] sm:$0xff]
    %v215 = vld [vmem:[%s2 + $0x8] sm:$0xff]
    %v216 = vld [vmem:[%s2 + $0x10] sm:$0xff]
    %v217 = vld [vmem:[%s2 + $0x18] sm:$0xff]
    %v218 = vld [vmem:[%s2 + $0x20] sm:$0xff]
    %v219 = vld [vmem:[%s2 + $0x28] sm:$0xff]
    %v220 = vld [vmem:[%s2 + $0x30] sm:$0xff]
    %v221 = vld [vmem:[%s2 + $0x38] sm:$0xff]
    %v222 = vld [vmem:[%s2 + $0x40] sm:$0xff]
    %v223 = vld [vmem:[%s2 + $0x48] sm:$0xff]
    %v224 = vld [vmem:[%s2 + $0x50] sm:$0xff]
    %v225 = vld [vmem:[%s2 + $0x58] sm:$0xff]
    %v226 = vld [vmem:[%s2 + $0x60] sm:$0xff]
    %v227 = vld [vmem:[%s2 + $0x68] sm:$0xff]
    %v228 = vld [vmem:[%s2 + $0x70] sm:$0xff]
    %v229 = vld [vmem:[%s2 + $0x78] sm:$0xff]
    %v230 = vld [vmem:[%s2 + $0x80] sm:$0xff]
    %v231 = vld [vmem:[%s2 + $0x88] sm:$0xff]
    %v232 = vld [vmem:[%s2 + $0x90] sm:$0xff]
    %v233 = vld [vmem:[%s2 + $0x98] sm:$0xff]
    %v234 = vld [vmem:[%s2 + $0xa0] sm:$0xff]
    %v235 = vld [vmem:[%s2 + $0xa8] sm:$0xff]
    %v236 = vld [vmem:[%s2 + $0xb0] sm:$0xff]
    %v237 = vld [vmem:[%s2 + $0xb8] sm:$0xff]
    %v238 = vld [vmem:[%s2 + $0xc0] sm:$0xff]
    %v239 = vld [vmem:[%s2 + $0xc8] sm:$0xff]
    %v240 = vld [vmem:[%s2 + $0xd0] sm:$0xff]
    %v241 = vld [vmem:[%s2 + $0xd8] sm:$0xff]
    %v242 = vld [vmem:[%s2 + $0xe0] sm:$0xff]
    %v243 = vld [vmem:[%s2 + $0xe8] sm:$0xff]
    %v244 = vld [vmem:[%s2 + $0xf0] sm:$0xff]
    %v245 = vld [vmem:[%s2 + $0xf8] sm:$0xff]
    %247 = vset.pattern.permute.xlu0 0
    %248 = vperm.xlu0 %247, %v214
    %v249 = vpop.permute.xlu0 %248
    %252 = vset.pattern.permute.xlu0 0
    %253 = vperm.xlu0 %252, %v215
    %v254 = vpop.permute.xlu0 %253
    %257 = vset.pattern.permute.xlu0 0
    %258 = vperm.xlu0 %257, %v216
    %v259 = vpop.permute.xlu0 %258
    %262 = vset.pattern.permute.xlu0 0
    %263 = vperm.xlu0 %262, %v217
    %v264 = vpop.permute.xlu0 %263
    %267 = vset.pattern.permute.xlu0 0
    %268 = vperm.xlu0 %267, %v218
    %v269 = vpop.permute.xlu0 %268
    %272 = vset.pattern.permute.xlu0 0
    %273 = vperm.xlu0 %272, %v219
    %v274 = vpop.permute.xlu0 %273
    %277 = vset.pattern.permute.xlu0 0
    %278 = vperm.xlu0 %277, %v220
    %v279 = vpop.permute.xlu0 %278
    %282 = vset.pattern.permute.xlu0 0
    %283 = vperm.xlu0 %282, %v221
    %v284 = vpop.permute.xlu0 %283
    %287 = vset.pattern.permute.xlu0 0
    %288 = vperm.xlu0 %287, %v222
    %v289 = vpop.permute.xlu0 %288
    %292 = vset.pattern.permute.xlu0 0
    %293 = vperm.xlu0 %292, %v223
    %v294 = vpop.permute.xlu0 %293
    %297 = vset.pattern.permute.xlu0 0
    %298 = vperm.xlu0 %297, %v224
    %v299 = vpop.permute.xlu0 %298
    %302 = vset.pattern.permute.xlu0 0
    %303 = vperm.xlu0 %302, %v225
    %v304 = vpop.permute.xlu0 %303
    %307 = vset.pattern.permute.xlu0 0
    %308 = vperm.xlu0 %307, %v226
    %v309 = vpop.permute.xlu0 %308
    %312 = vset.pattern.permute.xlu0 0
    %313 = vperm.xlu0 %312, %v227
    %v314 = vpop.permute.xlu0 %313
    %317 = vset.pattern.permute.xlu0 0
    %318 = vperm.xlu0 %317, %v228
    %v319 = vpop.permute.xlu0 %318
    %322 = vset.pattern.permute.xlu0 0
    %323 = vperm.xlu0 %322, %v229
    %v324 = vpop.permute.xlu0 %323
    %327 = vset.pattern.permute.xlu0 0
    %328 = vperm.xlu0 %327, %v230
    %v329 = vpop.permute.xlu0 %328
    %332 = vset.pattern.permute.xlu0 0
    %333 = vperm.xlu0 %332, %v231
    %v334 = vpop.permute.xlu0 %333
    %337 = vset.pattern.permute.xlu0 0
    %338 = vperm.xlu0 %337, %v232
    %v339 = vpop.permute.xlu0 %338
    %342 = vset.pattern.permute.xlu0 0
    %343 = vperm.xlu0 %342, %v233
    %v344 = vpop.permute.xlu0 %343
    %347 = vset.pattern.permute.xlu0 0
    %348 = vperm.xlu0 %347, %v234
    %v349 = vpop.permute.xlu0 %348
    %352 = vset.pattern.permute.xlu0 0
    %353 = vperm.xlu0 %352, %v235
    %v354 = vpop.permute.xlu0 %353
    %357 = vset.pattern.permute.xlu0 0
    %358 = vperm.xlu0 %357, %v236
    %v359 = vpop.permute.xlu0 %358
    %362 = vset.pattern.permute.xlu0 0
    %363 = vperm.xlu0 %362, %v237
    %v364 = vpop.permute.xlu0 %363
    %367 = vset.pattern.permute.xlu0 0
    %368 = vperm.xlu0 %367, %v238
    %v369 = vpop.permute.xlu0 %368
    %372 = vset.pattern.permute.xlu0 0
    %373 = vperm.xlu0 %372, %v239
    %v374 = vpop.permute.xlu0 %373
    %377 = vset.pattern.permute.xlu0 0
    %378 = vperm.xlu0 %377, %v240
    %v379 = vpop.permute.xlu0 %378
    %382 = vset.pattern.permute.xlu0 0
    %383 = vperm.xlu0 %382, %v241
    %v384 = vpop.permute.xlu0 %383
    %387 = vset.pattern.permute.xlu0 0
    %388 = vperm.xlu0 %387, %v242
    %v389 = vpop.permute.xlu0 %388
    %392 = vset.pattern.permute.xlu0 0
    %393 = vperm.xlu0 %392, %v243
    %v394 = vpop.permute.xlu0 %393
    %397 = vset.pattern.permute.xlu0 0
    %398 = vperm.xlu0 %397, %v244
    %v399 = vpop.permute.xlu0 %398
    %402 = vset.pattern.permute.xlu0 0
    %403 = vperm.xlu0 %402, %v245
    %v404 = vpop.permute.xlu0 %403
    %v438 = vunpack.c.l.b16 %v182
    %v439 = vunpack.c.l.b16 %v183
    %v440 = vunpack.c.l.b16 %v184
    %v441 = vunpack.c.l.b16 %v185
    %v442 = vunpack.c.l.b16 %v186
    %v443 = vunpack.c.l.b16 %v187
    %v444 = vunpack.c.l.b16 %v188
    %v445 = vunpack.c.l.b16 %v189
    %v446 = vunpack.c.l.b16 %v190
    %v447 = vunpack.c.l.b16 %v191
    %v448 = vunpack.c.l.b16 %v192
    %v449 = vunpack.c.l.b16 %v193
    %v450 = vunpack.c.l.b16 %v194
    %v451 = vunpack.c.l.b16 %v195
    %v452 = vunpack.c.l.b16 %v196
    %v453 = vunpack.c.l.b16 %v197
    %v454 = vunpack.c.l.b16 %v198
    %v455 = vunpack.c.l.b16 %v199
    %v456 = vunpack.c.l.b16 %v200
    %v457 = vunpack.c.l.b16 %v201
    %v458 = vunpack.c.l.b16 %v202
    %v459 = vunpack.c.l.b16 %v203
    %v460 = vunpack.c.l.b16 %v204
    %v461 = vunpack.c.l.b16 %v205
    %v462 = vunpack.c.l.b16 %v206
    %v463 = vunpack.c.l.b16 %v207
    %v464 = vunpack.c.l.b16 %v208
    %v465 = vunpack.c.l.b16 %v209
    %v466 = vunpack.c.l.b16 %v210
    %v467 = vunpack.c.l.b16 %v211
    %v468 = vunpack.c.l.b16 %v212
    %v469 = vunpack.c.l.b16 %v213
    %v470 = vpack.c.b16 %v439, %v438
    %v471 = vpack.c.b16 %v441, %v440
    %v472 = vpack.c.b16 %v443, %v442
    %v473 = vpack.c.b16 %v445, %v444
    %v474 = vpack.c.b16 %v447, %v446
    %v475 = vpack.c.b16 %v449, %v448
    %v476 = vpack.c.b16 %v451, %v450
    %v477 = vpack.c.b16 %v453, %v452
    %v478 = vpack.c.b16 %v455, %v454
    %v479 = vpack.c.b16 %v457, %v456
    %v480 = vpack.c.b16 %v459, %v458
    %v481 = vpack.c.b16 %v461, %v460
    %v482 = vpack.c.b16 %v463, %v462
    %v483 = vpack.c.b16 %v465, %v464
    %v484 = vpack.c.b16 %v467, %v466
    %v485 = vpack.c.b16 %v469, %v468
    %502 = vmatprep.subr.bf16.mxu0 0
    %503 = vmatpush1.bf16.msra.mxu0 %v174
    %504 = vmatprep.subr.bf16.mxu0 0
    %505 = vmatpush1.bf16.msra.mxu0 %v175
    %506 = vmatprep.subr.bf16.mxu0 0
    %507 = vmatpush1.bf16.msra.mxu0 %v176
    %508 = vmatprep.subr.bf16.mxu0 0
    %509 = vmatpush1.bf16.msra.mxu0 %v177
    %510 = vmatprep.subr.bf16.mxu0 0
    %511 = vmatpush1.bf16.msra.mxu0 %v178
    %512 = vmatprep.subr.bf16.mxu0 0
    %513 = vmatpush1.bf16.msra.mxu0 %v179
    %514 = vmatprep.subr.bf16.mxu0 0
    %515 = vmatpush1.bf16.msra.mxu0 %v180
    %516 = vmatprep.subr.bf16.mxu0 0
    %517 = vmatpush1.bf16.msra.mxu0 %v181
    %518 = vmatprep.subr.bf16.mxu0 0
    %519 = vmatpush1.bf16.msra.mxu0 0
    %520 = vmatprep.subr.bf16.mxu0 0
    %521 = vmatpush1.bf16.msra.mxu0 0
    %522 = vmatprep.subr.bf16.mxu0 0
    %523 = vmatpush1.bf16.msra.mxu0 0
    %524 = vmatprep.subr.bf16.mxu0 0
    %525 = vmatpush1.bf16.msra.mxu0 0
    %526 = vmatprep.subr.bf16.mxu0 0
    %527 = vmatpush1.bf16.msra.mxu0 0
    %528 = vmatprep.subr.bf16.mxu0 0
    %529 = vmatpush1.bf16.msra.mxu0 0
    %530 = vmatprep.subr.bf16.mxu0 0
    %531 = vmatpush1.bf16.msra.mxu0 0
    %532 = vmatprep.subr.bf16.mxu0 0
    %533 = vmatpush1.bf16.msra.mxu0 0
    %534 = vmatprep.mubr.bf16.mxu0 0
    %535 = vmatmul.mubr.bf16.gmra.mrb[0].mxu0 %v470
    %v536 = vpop.f32.mrb[0].mxu0
    %v537 = vadd.f32 %v249, %v536
    %v538 = vpop.f32.mrb[0].mxu0
    %v539 = vpop.f32.mrb[0].mxu0
    %v540 = vadd.f32 %v254, %v539
    %v541 = vpop.f32.mrb[0].mxu0
    %542 = vmatprep.mubr.bf16.mxu0 0
    %543 = vmatmul.mubr.bf16.gmra.mrb[0].mxu0 %v471
    %v544 = vpop.f32.mrb[0].mxu0
    %v545 = vadd.f32 %v259, %v544
    %v546 = vpop.f32.mrb[0].mxu0
    %v547 = vpop.f32.mrb[0].mxu0
    %v548 = vadd.f32 %v264, %v547
    %v549 = vpop.f32.mrb[0].mxu0
    %550 = vmatprep.mubr.bf16.mxu0 0
    %551 = vmatmul.mubr.bf16.gmra.mrb[0].mxu0 %v472
    %v552 = vpop.f32.mrb[0].mxu0
    %v553 = vadd.f32 %v269, %v552
    %v554 = vpop.f32.mrb[0].mxu0
    %v555 = vpop.f32.mrb[0].mxu0
    %v556 = vadd.f32 %v274, %v555
    %v557 = vpop.f32.mrb[0].mxu0
    %558 = vmatprep.mubr.bf16.mxu0 0
    %559 = vmatmul.mubr.bf16.gmra.mrb[0].mxu0 %v473
    %v560 = vpop.f32.mrb[0].mxu0
    %v561 = vadd.f32 %v279, %v560
    %v562 = vpop.f32.mrb[0].mxu0
    %v563 = vpop.f32.mrb[0].mxu0
    %v564 = vadd.f32 %v284, %v563
    %v565 = vpop.f32.mrb[0].mxu0
    %566 = vmatprep.mubr.bf16.mxu0 0
    %567 = vmatmul.mubr.bf16.gmra.mrb[0].mxu0 %v474
    %v568 = vpop.f32.mrb[0].mxu0
    %v569 = vadd.f32 %v289, %v568
    %v570 = vpop.f32.mrb[0].mxu0
    %v571 = vpop.f32.mrb[0].mxu0
    %v572 = vadd.f32 %v294, %v571
    %v573 = vpop.f32.mrb[0].mxu0
    %574 = vmatprep.mubr.bf16.mxu0 0
    %575 = vmatmul.mubr.bf16.gmra.mrb[0].mxu0 %v475
    %v576 = vpop.f32.mrb[0].mxu0
    %v577 = vadd.f32 %v299, %v576
    %v578 = vpop.f32.mrb[0].mxu0
    %v579 = vpop.f32.mrb[0].mxu0
    %v580 = vadd.f32 %v304, %v579
    %v581 = vpop.f32.mrb[0].mxu0
    %582 = vmatprep.mubr.bf16.mxu0 0
    %583 = vmatmul.mubr.bf16.gmra.mrb[0].mxu0 %v476
    %v584 = vpop.f32.mrb[0].mxu0
    %v585 = vadd.f32 %v309, %v584
    %v586 = vpop.f32.mrb[0].mxu0
    %v587 = vpop.f32.mrb[0].mxu0
    %v588 = vadd.f32 %v314, %v587
    %v589 = vpop.f32.mrb[0].mxu0
    %590 = vmatprep.mubr.bf16.mxu0 0
    %591 = vmatmul.mubr.bf16.gmra.mrb[0].mxu0 %v477
    %v592 = vpop.f32.mrb[0].mxu0
    %v593 = vadd.f32 %v319, %v592
    %v594 = vpop.f32.mrb[0].mxu0
    %v595 = vpop.f32.mrb[0].mxu0
    %v596 = vadd.f32 %v324, %v595
    %v597 = vpop.f32.mrb[0].mxu0
    %598 = vmatprep.mubr.bf16.mxu0 0
    %599 = vmatmul.mubr.bf16.gmra.mrb[0].mxu0 %v478
    %v600 = vpop.f32.mrb[0].mxu0
    %v601 = vadd.f32 %v329, %v600
    %v602 = vpop.f32.mrb[0].mxu0
    %v603 = vpop.f32.mrb[0].mxu0
    %v604 = vadd.f32 %v334, %v603
    %v605 = vpop.f32.mrb[0].mxu0
    %606 = vmatprep.mubr.bf16.mxu0 0
    %607 = vmatmul.mubr.bf16.gmra.mrb[0].mxu0 %v479
    %v608 = vpop.f32.mrb[0].mxu0
    %v609 = vadd.f32 %v339, %v608
    %v610 = vpop.f32.mrb[0].mxu0
    %v611 = vpop.f32.mrb[0].mxu0
    %v612 = vadd.f32 %v344, %v611
    %v613 = vpop.f32.mrb[0].mxu0
    %614 = vmatprep.mubr.bf16.mxu0 0
    %615 = vmatmul.mubr.bf16.gmra.mrb[0].mxu0 %v480
    %v616 = vpop.f32.mrb[0].mxu0
    %v617 = vadd.f32 %v349, %v616
    %v618 = vpop.f32.mrb[0].mxu0
    %v619 = vpop.f32.mrb[0].mxu0
    %v620 = vadd.f32 %v354, %v619
    %v621 = vpop.f32.mrb[0].mxu0
    %622 = vmatprep.mubr.bf16.mxu0 0
    %623 = vmatmul.mubr.bf16.gmra.mrb[0].mxu0 %v481
    %v624 = vpop.f32.mrb[0].mxu0
    %v625 = vadd.f32 %v359, %v624
    %v626 = vpop.f32.mrb[0].mxu0
    %v627 = vpop.f32.mrb[0].mxu0
    %v628 = vadd.f32 %v364, %v627
    %v629 = vpop.f32.mrb[0].mxu0
    %630 = vmatprep.mubr.bf16.mxu0 0
    %631 = vmatmul.mubr.bf16.gmra.mrb[0].mxu0 %v482
    %v632 = vpop.f32.mrb[0].mxu0
    %v633 = vadd.f32 %v369, %v632
    %v634 = vpop.f32.mrb[0].mxu0
    %v635 = vpop.f32.mrb[0].mxu0
    %v636 = vadd.f32 %v374, %v635
    %v637 = vpop.f32.mrb[0].mxu0
    %638 = vmatprep.mubr.bf16.mxu0 0
    %639 = vmatmul.mubr.bf16.gmra.mrb[0].mxu0 %v483
    %v640 = vpop.f32.mrb[0].mxu0
    %v641 = vadd.f32 %v379, %v640
    %v642 = vpop.f32.mrb[0].mxu0
    %v643 = vpop.f32.mrb[0].mxu0
    %v644 = vadd.f32 %v384, %v643
    %v645 = vpop.f32.mrb[0].mxu0
    %646 = vmatprep.mubr.bf16.mxu0 0
    %647 = vmatmul.mubr.bf16.gmra.mrb[0].mxu0 %v484
    %v648 = vpop.f32.mrb[0].mxu0
    %v649 = vadd.f32 %v389, %v648
    %v650 = vpop.f32.mrb[0].mxu0
    %v651 = vpop.f32.mrb[0].mxu0
    %v652 = vadd.f32 %v394, %v651
    %v653 = vpop.f32.mrb[0].mxu0
    %654 = vmatprep.mubr.bf16.mxu0 0
    %655 = vmatmul.mubr.bf16.gmra.mrb[0].mxu0 %v485
    %v656 = vpop.f32.mrb[0].mxu0
    %v657 = vadd.f32 %v399, %v656
    %v658 = vpop.f32.mrb[0].mxu0
    %v659 = vpop.f32.mrb[0].mxu0
    %v660 = vadd.f32 %v404, %v659
    %v661 = vpop.f32.mrb[0].mxu0
    %662 = vdwg.mxu0
    %v663 = vmax.f32 %v537, 0.0
    %v664 = vmax.f32 %v540, 0.0
    %v665 = vmax.f32 %v545, 0.0
    %v666 = vmax.f32 %v548, 0.0
    %v667 = vmax.f32 %v553, 0.0
    %v668 = vmax.f32 %v556, 0.0
    %v669 = vmax.f32 %v561, 0.0
    %v670 = vmax.f32 %v564, 0.0
    %v671 = vmax.f32 %v569, 0.0
    %v672 = vmax.f32 %v572, 0.0
    %v673 = vmax.f32 %v577, 0.0
    %v674 = vmax.f32 %v580, 0.0
    %v675 = vmax.f32 %v585, 0.0
    %v676 = vmax.f32 %v588, 0.0
    %v677 = vmax.f32 %v593, 0.0
    %v678 = vmax.f32 %v596, 0.0
    %v679 = vmax.f32 %v601, 0.0
    %v680 = vmax.f32 %v604, 0.0
    %v681 = vmax.f32 %v609, 0.0
    %v682 = vmax.f32 %v612, 0.0
    %v683 = vmax.f32 %v617, 0.0
    %v684 = vmax.f32 %v620, 0.0
    %v685 = vmax.f32 %v625, 0.0
    %v686 = vmax.f32 %v628, 0.0
    %v687 = vmax.f32 %v633, 0.0
    %v688 = vmax.f32 %v636, 0.0
    %v689 = vmax.f32 %v641, 0.0
    %v690 = vmax.f32 %v644, 0.0
    %v691 = vmax.f32 %v649, 0.0
    %v692 = vmax.f32 %v652, 0.0
    %v693 = vmax.f32 %v657, 0.0
    %v694 = vmax.f32 %v660, 0.0
    %v695 = vld [vmem:[%s3] sm:$0xff]
    %v696 = vld [vmem:[%s3 + $0x8] sm:$0xff]
    %v697 = vld [vmem:[%s3 + $0x10] sm:$0xff]
    %v698 = vld [vmem:[%s3 + $0x18] sm:$0xff]
    %v699 = vld [vmem:[%s3 + $0x20] sm:$0xff]
    %v700 = vld [vmem:[%s3 + $0x28] sm:$0xff]
    %v701 = vld [vmem:[%s3 + $0x30] sm:$0xff]
    %v702 = vld [vmem:[%s3 + $0x38] sm:$0xff]
    %v703 = vld [vmem:[%s3 + $0x40] sm:$0xff]
    %v704 = vld [vmem:[%s3 + $0x48] sm:$0xff]
    %v705 = vld [vmem:[%s3 + $0x50] sm:$0xff]
    %v706 = vld [vmem:[%s3 + $0x58] sm:$0xff]
    %v707 = vld [vmem:[%s3 + $0x60] sm:$0xff]
    %v708 = vld [vmem:[%s3 + $0x68] sm:$0xff]
    %v709 = vld [vmem:[%s3 + $0x70] sm:$0xff]
    %v710 = vld [vmem:[%s3 + $0x78] sm:$0xff]
    %v711 = vpack.c.bf16 %v664, %v663
    %v712 = vpack.c.bf16 %v666, %v665
    %v713 = vpack.c.bf16 %v668, %v667
    %v714 = vpack.c.bf16 %v670, %v669
    %v715 = vpack.c.bf16 %v672, %v671
    %v716 = vpack.c.bf16 %v674, %v673
    %v717 = vpack.c.bf16 %v676, %v675
    %v718 = vpack.c.bf16 %v678, %v677
    %v719 = vpack.c.bf16 %v680, %v679
    %v720 = vpack.c.bf16 %v682, %v681
    %v721 = vpack.c.bf16 %v684, %v683
    %v722 = vpack.c.bf16 %v686, %v685
    %v723 = vpack.c.bf16 %v688, %v687
    %v724 = vpack.c.bf16 %v690, %v689
    %v725 = vpack.c.bf16 %v692, %v691
    %v726 = vpack.c.bf16 %v694, %v693
    %v727 = vld [vmem:[%s4] sm:$0xff]
    %v728 = vld [vmem:[%s4 + $0x8] sm:$0xff]
    %v729 = vld [vmem:[%s4 + $0x10] sm:$0xff]
    %v730 = vld [vmem:[%s4 + $0x18] sm:$0xff]
    %v731 = vld [vmem:[%s4 + $0x20] sm:$0xff]
    %v732 = vld [vmem:[%s4 + $0x28] sm:$0xff]
    %v733 = vld [vmem:[%s4 + $0x30] sm:$0xff]
    %v734 = vld [vmem:[%s4 + $0x38] sm:$0xff]
    %v735 = vld [vmem:[%s4 + $0x40] sm:$0xff]
    %v736 = vld [vmem:[%s4 + $0x48] sm:$0xff]
    %v737 = vld [vmem:[%s4 + $0x50] sm:$0xff]
    %v738 = vld [vmem:[%s4 + $0x58] sm:$0xff]
    %v739 = vld [vmem:[%s4 + $0x60] sm:$0xff]
    %v740 = vld [vmem:[%s4 + $0x68] sm:$0xff]
    %v741 = vld [vmem:[%s4 + $0x70] sm:$0xff]
    %v742 = vld [vmem:[%s4 + $0x78] sm:$0xff]
    %744 = vset.pattern.permute.xlu0 0
    %745 = vperm.xlu0 %744, %v727
    %v746 = vpop.permute.xlu0 %745
    %749 = vset.pattern.permute.xlu0 0
    %750 = vperm.xlu0 %749, %v728
    %v751 = vpop.permute.xlu0 %750
    %754 = vset.pattern.permute.xlu0 0
    %755 = vperm.xlu0 %754, %v729
    %v756 = vpop.permute.xlu0 %755
    %759 = vset.pattern.permute.xlu0 0
    %760 = vperm.xlu0 %759, %v730
    %v761 = vpop.permute.xlu0 %760
    %764 = vset.pattern.permute.xlu0 0
    %765 = vperm.xlu0 %764, %v731
    %v766 = vpop.permute.xlu0 %765
    %769 = vset.pattern.permute.xlu0 0
    %770 = vperm.xlu0 %769, %v732
    %v771 = vpop.permute.xlu0 %770
    %774 = vset.pattern.permute.xlu0 0
    %775 = vperm.xlu0 %774, %v733
    %v776 = vpop.permute.xlu0 %775
    %779 = vset.pattern.permute.xlu0 0
    %780 = vperm.xlu0 %779, %v734
    %v781 = vpop.permute.xlu0 %780
    %784 = vset.pattern.permute.xlu0 0
    %785 = vperm.xlu0 %784, %v735
    %v786 = vpop.permute.xlu0 %785
    %789 = vset.pattern.permute.xlu0 0
    %790 = vperm.xlu0 %789, %v736
    %v791 = vpop.permute.xlu0 %790
    %794 = vset.pattern.permute.xlu0 0
    %795 = vperm.xlu0 %794, %v737
    %v796 = vpop.permute.xlu0 %795
    %799 = vset.pattern.permute.xlu0 0
    %800 = vperm.xlu0 %799, %v738
    %v801 = vpop.permute.xlu0 %800
    %804 = vset.pattern.permute.xlu0 0
    %805 = vperm.xlu0 %804, %v739
    %v806 = vpop.permute.xlu0 %805
    %809 = vset.pattern.permute.xlu0 0
    %810 = vperm.xlu0 %809, %v740
    %v811 = vpop.permute.xlu0 %810
    %814 = vset.pattern.permute.xlu0 0
    %815 = vperm.xlu0 %814, %v741
    %v816 = vpop.permute.xlu0 %815
    %819 = vset.pattern.permute.xlu0 0
    %820 = vperm.xlu0 %819, %v742
    %v821 = vpop.permute.xlu0 %820
    %v839 = vunpack.c.l.b16 %v695
    %v840 = vunpack.c.h.b16 %v695
    %v841 = vunpack.c.l.b16 %v696
    %v842 = vunpack.c.h.b16 %v696
    %v843 = vunpack.c.l.b16 %v697
    %v844 = vunpack.c.h.b16 %v697
    %v845 = vunpack.c.l.b16 %v698
    %v846 = vunpack.c.h.b16 %v698
    %v847 = vunpack.c.l.b16 %v699
    %v848 = vunpack.c.h.b16 %v699
    %v849 = vunpack.c.l.b16 %v700
    %v850 = vunpack.c.h.b16 %v700
    %v851 = vunpack.c.l.b16 %v701
    %v852 = vunpack.c.h.b16 %v701
    %v853 = vunpack.c.l.b16 %v702
    %v854 = vunpack.c.h.b16 %v702
    %v855 = vunpack.c.l.b16 %v703
    %v856 = vunpack.c.h.b16 %v703
    %v857 = vunpack.c.l.b16 %v704
    %v858 = vunpack.c.h.b16 %v704
    %v859 = vunpack.c.l.b16 %v705
    %v860 = vunpack.c.h.b16 %v705
    %v861 = vunpack.c.l.b16 %v706
    %v862 = vunpack.c.h.b16 %v706
    %v863 = vunpack.c.l.b16 %v707
    %v864 = vunpack.c.h.b16 %v707
    %v865 = vunpack.c.l.b16 %v708
    %v866 = vunpack.c.h.b16 %v708
    %v867 = vunpack.c.l.b16 %v709
    %v868 = vunpack.c.h.b16 %v709
    %v869 = vunpack.c.l.b16 %v710
    %v870 = vunpack.c.h.b16 %v710
    %v871 = vpack.c.b16 %v841, %v839
    %v872 = vpack.c.b16 %v842, %v840
    %v873 = vpack.c.b16 %v845, %v843
    %v874 = vpack.c.b16 %v846, %v844
    %v875 = vpack.c.b16 %v849, %v847
    %v876 = vpack.c.b16 %v850, %v848
    %v877 = vpack.c.b16 %v853, %v851
    %v878 = vpack.c.b16 %v854, %v852
    %v879 = vpack.c.b16 %v857, %v855
    %v880 = vpack.c.b16 %v858, %v856
    %v881 = vpack.c.b16 %v861, %v859
    %v882 = vpack.c.b16 %v862, %v860
    %v883 = vpack.c.b16 %v865, %v863
    %v884 = vpack.c.b16 %v866, %v864
    %v885 = vpack.c.b16 %v869, %v867
    %v886 = vpack.c.b16 %v870, %v868
    %903 = vmatprep.subr.bf16.mxu0 0
    %904 = vmatpush1.bf16.msra.mxu0 %v711
    %905 = vmatprep.subr.bf16.mxu0 0
    %906 = vmatpush1.bf16.msra.mxu0 %v712
    %907 = vmatprep.subr.bf16.mxu0 0
    %908 = vmatpush1.bf16.msra.mxu0 %v713
    %909 = vmatprep.subr.bf16.mxu0 0
    %910 = vmatpush1.bf16.msra.mxu0 %v714
    %911 = vmatprep.subr.bf16.mxu0 0
    %912 = vmatpush1.bf16.msra.mxu0 %v715
    %913 = vmatprep.subr.bf16.mxu0 0
    %914 = vmatpush1.bf16.msra.mxu0 %v716
    %915 = vmatprep.subr.bf16.mxu0 0
    %916 = vmatpush1.bf16.msra.mxu0 %v717
    %917 = vmatprep.subr.bf16.mxu0 0
    %918 = vmatpush1.bf16.msra.mxu0 %v718
    %919 = vmatprep.subr.bf16.mxu0 0
    %920 = vmatpush1.bf16.msra.mxu0 %v719
    %921 = vmatprep.subr.bf16.mxu0 0
    %922 = vmatpush1.bf16.msra.mxu0 %v720
    %923 = vmatprep.subr.bf16.mxu0 0
    %924 = vmatpush1.bf16.msra.mxu0 %v721
    %925 = vmatprep.subr.bf16.mxu0 0
    %926 = vmatpush1.bf16.msra.mxu0 %v722
    %927 = vmatprep.subr.bf16.mxu0 0
    %928 = vmatpush1.bf16.msra.mxu0 %v723
    %929 = vmatprep.subr.bf16.mxu0 0
    %930 = vmatpush1.bf16.msra.mxu0 %v724
    %931 = vmatprep.subr.bf16.mxu0 0
    %932 = vmatpush1.bf16.msra.mxu0 %v725
    %933 = vmatprep.subr.bf16.mxu0 0
    %934 = vmatpush1.bf16.msra.mxu0 %v726
    %935 = vmatprep.mubr.bf16.mxu0 %v872
    %936 = vmatmul.mubr.bf16.gmra.mrb[0].mxu0 %v871
    %v937 = vpop.f32.mrb[0].mxu0
    %v938 = vadd.f32 %v746, %v937
    %v939 = vpop.f32.mrb[0].mxu0
    %v940 = vpop.f32.mrb[0].mxu0
    %v941 = vadd.f32 %v751, %v940
    %v942 = vpop.f32.mrb[0].mxu0
    %943 = vmatprep.mubr.bf16.mxu0 %v874
    %944 = vmatmul.mubr.bf16.gmra.mrb[0].mxu0 %v873
    %v945 = vpop.f32.mrb[0].mxu0
    %v946 = vadd.f32 %v756, %v945
    %v947 = vpop.f32.mrb[0].mxu0
    %v948 = vpop.f32.mrb[0].mxu0
    %v949 = vadd.f32 %v761, %v948
    %v950 = vpop.f32.mrb[0].mxu0
    %951 = vmatprep.mubr.bf16.mxu0 %v876
    %952 = vmatmul.mubr.bf16.gmra.mrb[0].mxu0 %v875
    %v953 = vpop.f32.mrb[0].mxu0
    %v954 = vadd.f32 %v766, %v953
    %v955 = vpop.f32.mrb[0].mxu0
    %v956 = vpop.f32.mrb[0].mxu0
    %v957 = vadd.f32 %v771, %v956
    %v958 = vpop.f32.mrb[0].mxu0
    %959 = vmatprep.mubr.bf16.mxu0 %v878
    %960 = vmatmul.mubr.bf16.gmra.mrb[0].mxu0 %v877
    %v961 = vpop.f32.mrb[0].mxu0
    %v962 = vadd.f32 %v776, %v961
    %v963 = vpop.f32.mrb[0].mxu0
    %v964 = vpop.f32.mrb[0].mxu0
    %v965 = vadd.f32 %v781, %v964
    %v966 = vpop.f32.mrb[0].mxu0
    %967 = vmatprep.mubr.bf16.mxu0 %v880
    %968 = vmatmul.mubr.bf16.gmra.mrb[0].mxu0 %v879
    %v969 = vpop.f32.mrb[0].mxu0
    %v970 = vadd.f32 %v786, %v969
    %v971 = vpop.f32.mrb[0].mxu0
    %v972 = vpop.f32.mrb[0].mxu0
    %v973 = vadd.f32 %v791, %v972
    %v974 = vpop.f32.mrb[0].mxu0
    %975 = vmatprep.mubr.bf16.mxu0 %v882
    %976 = vmatmul.mubr.bf16.gmra.mrb[0].mxu0 %v881
    %v977 = vpop.f32.mrb[0].mxu0
    %v978 = vadd.f32 %v796, %v977
    %v979 = vpop.f32.mrb[0].mxu0
    %v980 = vpop.f32.mrb[0].mxu0
    %v981 = vadd.f32 %v801, %v980
    %v982 = vpop.f32.mrb[0].mxu0
    %983 = vmatprep.mubr.bf16.mxu0 %v884
    %984 = vmatmul.mubr.bf16.gmra.mrb[0].mxu0 %v883
    %v985 = vpop.f32.mrb[0].mxu0
    %v986 = vadd.f32 %v806, %v985
    %v987 = vpop.f32.mrb[0].mxu0
    %v988 = vpop.f32.mrb[0].mxu0
    %v989 = vadd.f32 %v811, %v988
    %v990 = vpop.f32.mrb[0].mxu0
    %991 = vmatprep.mubr.bf16.mxu0 %v886
    %992 = vmatmul.mubr.bf16.gmra.mrb[0].mxu0 %v885
    %v993 = vpop.f32.mrb[0].mxu0
    %v994 = vadd.f32 %v816, %v993
    %v995 = vpop.f32.mrb[0].mxu0
    %v996 = vpop.f32.mrb[0].mxu0
    %v997 = vadd.f32 %v821, %v996
    %v998 = vpop.f32.mrb[0].mxu0
    %999 = vdwg.mxu0
    %v1000 = vmax.f32 %v938, 0.0
    %v1001 = vmax.f32 %v941, 0.0
    %v1002 = vmax.f32 %v946, 0.0
    %v1003 = vmax.f32 %v949, 0.0
    %v1004 = vmax.f32 %v954, 0.0
    %v1005 = vmax.f32 %v957, 0.0
    %v1006 = vmax.f32 %v962, 0.0
    %v1007 = vmax.f32 %v965, 0.0
    %v1008 = vmax.f32 %v970, 0.0
    %v1009 = vmax.f32 %v973, 0.0
    %v1010 = vmax.f32 %v978, 0.0
    %v1011 = vmax.f32 %v981, 0.0
    %v1012 = vmax.f32 %v986, 0.0
    %v1013 = vmax.f32 %v989, 0.0
    %v1014 = vmax.f32 %v994, 0.0
    %v1015 = vmax.f32 %v997, 0.0
    %v1016 = vld [vmem:[%s5] sm:$0xff]
    %v1017 = vld [vmem:[%s5 + $0x8] sm:$0xff]
    %v1018 = vld [vmem:[%s5 + $0x10] sm:$0xff]
    %v1019 = vld [vmem:[%s5 + $0x18] sm:$0xff]
    %v1020 = vld [vmem:[%s5 + $0x20] sm:$0xff]
    %v1021 = vld [vmem:[%s5 + $0x28] sm:$0xff]
    %v1022 = vld [vmem:[%s5 + $0x30] sm:$0xff]
    %v1023 = vld [vmem:[%s5 + $0x38] sm:$0xff]
    %v1024 = vld [vmem:[%s5 + $0x40] sm:$0xff]
    %v1025 = vld [vmem:[%s5 + $0x48] sm:$0xff]
    %v1026 = vld [vmem:[%s5 + $0x50] sm:$0xff]
    %v1027 = vld [vmem:[%s5 + $0x58] sm:$0xff]
    %v1028 = vld [vmem:[%s5 + $0x60] sm:$0xff]
    %v1029 = vld [vmem:[%s5 + $0x68] sm:$0xff]
    %v1030 = vld [vmem:[%s5 + $0x70] sm:$0xff]
    %v1031 = vld [vmem:[%s5 + $0x78] sm:$0xff]
    %1033 = vset.pattern.permute.xlu0 0
    %1034 = vperm.xlu0 %1033, %v1016
    %v1035 = vpop.permute.xlu0 %1034
    %1038 = vset.pattern.permute.xlu0 0
    %1039 = vperm.xlu0 %1038, %v1017
    %v1040 = vpop.permute.xlu0 %1039
    %1043 = vset.pattern.permute.xlu0 0
    %1044 = vperm.xlu0 %1043, %v1018
    %v1045 = vpop.permute.xlu0 %1044
    %1048 = vset.pattern.permute.xlu0 0
    %1049 = vperm.xlu0 %1048, %v1019
    %v1050 = vpop.permute.xlu0 %1049
    %1053 = vset.pattern.permute.xlu0 0
    %1054 = vperm.xlu0 %1053, %v1020
    %v1055 = vpop.permute.xlu0 %1054
    %1058 = vset.pattern.permute.xlu0 0
    %1059 = vperm.xlu0 %1058, %v1021
    %v1060 = vpop.permute.xlu0 %1059
    %1063 = vset.pattern.permute.xlu0 0
    %1064 = vperm.xlu0 %1063, %v1022
    %v1065 = vpop.permute.xlu0 %1064
    %1068 = vset.pattern.permute.xlu0 0
    %1069 = vperm.xlu0 %1068, %v1023
    %v1070 = vpop.permute.xlu0 %1069
    %1073 = vset.pattern.permute.xlu0 0
    %1074 = vperm.xlu0 %1073, %v1024
    %v1075 = vpop.permute.xlu0 %1074
    %1078 = vset.pattern.permute.xlu0 0
    %1079 = vperm.xlu0 %1078, %v1025
    %v1080 = vpop.permute.xlu0 %1079
    %1083 = vset.pattern.permute.xlu0 0
    %1084 = vperm.xlu0 %1083, %v1026
    %v1085 = vpop.permute.xlu0 %1084
    %1088 = vset.pattern.permute.xlu0 0
    %1089 = vperm.xlu0 %1088, %v1027
    %v1090 = vpop.permute.xlu0 %1089
    %1093 = vset.pattern.permute.xlu0 0
    %1094 = vperm.xlu0 %1093, %v1028
    %v1095 = vpop.permute.xlu0 %1094
    %1098 = vset.pattern.permute.xlu0 0
    %1099 = vperm.xlu0 %1098, %v1029
    %v1100 = vpop.permute.xlu0 %1099
    %1103 = vset.pattern.permute.xlu0 0
    %1104 = vperm.xlu0 %1103, %v1030
    %v1105 = vpop.permute.xlu0 %1104
    %1108 = vset.pattern.permute.xlu0 0
    %1109 = vperm.xlu0 %1108, %v1031
    %v1110 = vpop.permute.xlu0 %1109
    %v1112 = vmul.f32 %v1000, %v1035
    %v1113 = vmul.f32 %v1001, %v1040
    %v1114 = vmul.f32 %v1002, %v1045
    %v1115 = vmul.f32 %v1003, %v1050
    %v1116 = vmul.f32 %v1004, %v1055
    %v1117 = vmul.f32 %v1005, %v1060
    %v1118 = vmul.f32 %v1006, %v1065
    %v1119 = vmul.f32 %v1007, %v1070
    %v1120 = vmul.f32 %v1008, %v1075
    %v1121 = vmul.f32 %v1009, %v1080
    %v1122 = vmul.f32 %v1010, %v1085
    %v1123 = vmul.f32 %v1011, %v1090
    %v1124 = vmul.f32 %v1012, %v1095
    %v1125 = vmul.f32 %v1013, %v1100
    %v1126 = vmul.f32 %v1014, %v1105
    %v1127 = vmul.f32 %v1015, %v1110
    %vm1128 = vcmask 261120
    %v1129 = vsel %vm1128, %v1112, 0.0
    %v1130 = vsel %vm1128, %v1113, 0.0
    %v1131 = vadd.f32 %v1129, %v1130
    %v1132 = vsel %vm1128, %v1114, 0.0
    %v1133 = vadd.f32 %v1131, %v1132
    %v1134 = vsel %vm1128, %v1115, 0.0
    %v1135 = vadd.f32 %v1133, %v1134
    %v1136 = vrot.slane %v1135, 4
    %v1137 = vadd.f32 %v1135, %v1136
    %v1138 = vrot.slane %v1137, 2
    %v1139 = vadd.f32 %v1137, %v1138
    %v1140 = vrot.slane %v1139, 1
    %v1141 = vadd.f32 %v1139, %v1140
    %v1142 = vsel %vm1128, %v1116, 0.0
    %v1143 = vsel %vm1128, %v1117, 0.0
    %v1144 = vadd.f32 %v1142, %v1143
    %v1145 = vsel %vm1128, %v1118, 0.0
    %v1146 = vadd.f32 %v1144, %v1145
    %v1147 = vsel %vm1128, %v1119, 0.0
    %v1148 = vadd.f32 %v1146, %v1147
    %v1149 = vrot.slane %v1148, 4
    %v1150 = vadd.f32 %v1148, %v1149
    %v1151 = vrot.slane %v1150, 2
    %v1152 = vadd.f32 %v1150, %v1151
    %v1153 = vrot.slane %v1152, 1
    %v1154 = vadd.f32 %v1152, %v1153
    %v1155 = vsel %vm1128, %v1120, 0.0
    %v1156 = vsel %vm1128, %v1121, 0.0
    %v1157 = vadd.f32 %v1155, %v1156
    %v1158 = vsel %vm1128, %v1122, 0.0
    %v1159 = vadd.f32 %v1157, %v1158
    %v1160 = vsel %vm1128, %v1123, 0.0
    %v1161 = vadd.f32 %v1159, %v1160
    %v1162 = vrot.slane %v1161, 4
    %v1163 = vadd.f32 %v1161, %v1162
    %v1164 = vrot.slane %v1163, 2
    %v1165 = vadd.f32 %v1163, %v1164
    %v1166 = vrot.slane %v1165, 1
    %v1167 = vadd.f32 %v1165, %v1166
    %v1168 = vsel %vm1128, %v1124, 0.0
    %v1169 = vsel %vm1128, %v1125, 0.0
    %v1170 = vadd.f32 %v1168, %v1169
    %v1171 = vsel %vm1128, %v1126, 0.0
    %v1172 = vadd.f32 %v1170, %v1171
    %v1173 = vsel %vm1128, %v1127, 0.0
    %v1174 = vadd.f32 %v1172, %v1173
    %v1175 = vrot.slane %v1174, 4
    %v1176 = vadd.f32 %v1174, %v1175
    %v1177 = vrot.slane %v1176, 2
    %v1178 = vadd.f32 %v1176, %v1177
    %v1179 = vrot.slane %v1178, 1
    %v1180 = vadd.f32 %v1178, %v1179
    %vm1181 = vcmask 1040384
    %v1182 = vsel %vm1181, %v1141, %v1154
    %vm1183 = vcmask 1041408
    %v1184 = vsel %vm1183, %v1182, %v1167
    %vm1185 = vcmask 1042432
    %v1186 = vsel %vm1185, %v1184, %v1180
    %v1187 = vld [vmem:[#allocation2] sm:$0x1]
    %v1189 = vlaneseq
    %v1190 = vshrl.u32 %v1189, 7
    %v1191 = vsub.s32 0, %v1190
    %v1192 = vrot.slane %v1187, %v1191
    %1193 = vset.pattern.permute.xlu0 0
    %1194 = vperm.xlu0 %1193, %v1192
    %v1195 = vpop.permute.xlu0 %1194
    %v1197 = vadd.f32 %v1186, %v1195
    %v1198 = vxor.u32 %v1197, 2147483648
    %v1199 = vmul.f32 %v1198, 1.442695
    %v1200 = vpow.pop %v1199
    %v1201 = vadd.f32 %v1200, 1.0
    %v1202 = vrcp.pop %v1201
    %v1203 = vmul.f32 1.0, %v1202
    %vm1204 = vcmask 257024
    %1205 = vst.msk [vmem:[#allocation3] sm:$0xf] %vm1204, %v1203
    // Predicated region
    $region30: #{tpu_custom_call.1} parent=1 // pred_check
      _
    $region31: #{tpu_custom_call.1} parent=1 // pred_check_branch
      %1207 = sbr.rel (0) target = $region33
    $region32: #{tpu_custom_call.1} parent=1 // pred_region
      %s1209 = ssub.s32 64, 64
      %1210 = vsyncadd [#allocation4], %s1209
      %s1212 = sshll.u32 [#allocation3], 4
      %s1213 = int_to_ptr.vmem [resolvable:$true] %s1212
      %1215 = dma.vmem_to_hbm [thread:$0]  %s1213, 64, %s7, [#allocation4]
    $region33: #{tpu_custom_call.1} parent=1 // pred_fallthru
      _
    // Predicated region
    $region34: #{tpu_custom_call.1} parent=1 // pred_check
      _
    $region35: #{tpu_custom_call.1} parent=1 // pred_check_branch
      %1217 = sbr.rel (0) target = $region37
    $region36: #{tpu_custom_call.1} parent=1 // pred_region
      %1218 = dma.done [#allocation4], 64
    $region37: #{tpu_custom_call.1} parent=1 // pred_fallthru
      _
    %1219 = vsyncpa [#allocation4], 1

</llo_original>
